<compile_context>
chip_gen: v7x
topology: tpu7x:2x2x1
jax: 0.10.0
libtpu: 0.0.40
codegen_flags: <defaults>
</compile_context>

<pallas_src>
import math

import jax
import jax.numpy as jnp
from jax.experimental import pallas as pl
from jax.experimental.pallas import tpu as pltpu

_A = math.sqrt(2.0 / math.pi)        # sqrt(2/pi)
_B = _A * 0.044715                   # sqrt(2/pi) * 0.044715

_LANES = 128                         # vreg lane width (last dim)
_SUBLANE_PACK = 32                   # rows per vreg for the narrowest dtypes

_TARGET_BLOCK_ELEMS = 1 << 20        # ~1M elements/block (4 MiB of f32 compute)
_SINGLE_BLOCK_BYTES = 256 * 1024     # below this: 1 block; above: >=2 blocks
_VMEM_LIMIT_BYTES = 48 * 1024 * 1024  # safe on v7x (64 MiB phys), ample on v5e/v6e


def _gelu_kernel(x_ref, o_ref):
    x = x_ref[...].astype(jnp.float32)
    x2 = x * x
    inner = x * (_A + _B * x2)                    # sqrt(2/pi) * (x + 0.044715 x^3)
    y = 0.5 * x * (1.0 + jnp.tanh(inner))         # tanh -> EUP slot
    o_ref[...] = y.astype(o_ref.dtype)


def _round_up(a: int, b: int) -> int:
    return ((a + b - 1) // b) * b


def gelu(x: jax.Array) -> jax.Array:
    """Tanh-approximate GELU, elementwise, via a Pallas TPU kernel.

    Compute is done in float32 regardless of input dtype; output keeps the
    input dtype.
    """
    orig_shape = x.shape
    orig_dtype = x.dtype
    n = x.size
    if n == 0:
        return x

    itemsize = jnp.dtype(orig_dtype).itemsize
    ragged = (n % _LANES) != 0

    if ragged:
        # TODO(synk): replace this pad/slice with an in-kernel masked final
        # tile (scalar-prefetch n + pltpu.store(..., mask=...)) to avoid the
        # two extra HBM passes on ragged flat sizes. Ragged sizes are rare for
        # MLP activations (hidden dims are multiples of 128), so the simple,
        # robust path is kept here.
        n_pad = _round_up(n, _LANES)
        x2d = jnp.pad(x.reshape(-1), (0, n_pad - n)).reshape(-1, _LANES)
    else:
        # Free reshape of a contiguous array: no pad, no copy.
        x2d = x.reshape(-1, _LANES)

    rows = x2d.shape[0]
    full_bytes = rows * _LANES * itemsize

    # Rows per block sized by element count (f32 compute intermediates),
    # rounded to a multiple of 32 so packed dtypes stay sublane-aligned.
    max_rows = max(
        _SUBLANE_PACK,
        (_TARGET_BLOCK_ELEMS // _LANES) // _SUBLANE_PACK * _SUBLANE_PACK,
    )

    if full_bytes <= _SINGLE_BLOCK_BYTES:
        # Tiny input: one block equal to the full array shape (satisfies the
        # (8, 128) rule without over-padding rows); splitting would only add
        # fixed per-step overhead.
        row_tile = rows
        grid = (1,)
    else:
        # Medium/large input: at least 2 blocks so both v7x TensorCores get
        # work, capped at ~1M elements per block. Pallas masks a ragged final
        # block automatically.
        row_tile = min(max_rows, _round_up(pl.cdiv(rows, 2), _SUBLANE_PACK))
        n_blocks = pl.cdiv(rows, row_tile)
        if n_blocks % 2 == 1 and n_blocks < 8:
            # Small odd grids are 2-vs-1 imbalanced across v7x's two cores;
            # shrink the tile slightly to make the step count even.
            row_tile = _round_up(pl.cdiv(rows, n_blocks + 1), _SUBLANE_PACK)
            n_blocks = pl.cdiv(rows, row_tile)
        grid = (n_blocks,)

    out2d = pl.pallas_call(
        _gelu_kernel,
        out_shape=jax.ShapeDtypeStruct((rows, _LANES), orig_dtype),
        grid_spec=pltpu.PrefetchScalarGridSpec(
            num_scalar_prefetch=0,
            grid=grid,
            in_specs=[pl.BlockSpec((row_tile, _LANES), lambda i: (i, 0))],
            out_specs=pl.BlockSpec((row_tile, _LANES), lambda i: (i, 0)),
        ),
        compiler_params=pltpu.CompilerParams(
            dimension_semantics=("parallel",),
            vmem_limit_bytes=_VMEM_LIMIT_BYTES,
        ),
    )(x2d)

    if ragged:
        return out2d.reshape(-1)[:n].reshape(orig_shape)
    return out2d.reshape(orig_shape)


def _gelu_ref(x):
    xf = x.astype(jnp.float32)
    y = 0.5 * xf * (1.0 + jnp.tanh(_A * (xf + 0.044715 * xf**3)))
    return y.astype(x.dtype)


if __name__ == "__main__":
    key = jax.random.PRNGKey(0)

    # Small NCHW-like activation tensor (batch=2, channels=4, spatial=16x16):
    # aligned flat size, single-block path.
    x = jax.random.normal(key, (2, 4, 16, 16), dtype=jnp.float32)
    out = gelu(x)
    jax.block_until_ready(out)
    ref = _gelu_ref(x)
    assert out.shape == x.shape and out.dtype == x.dtype
    assert jnp.allclose(out, ref, atol=1e-5, rtol=1e-5)

    # Medium aligned input: exercises the multi-block (even-grid) path.
    x_med = jax.random.normal(jax.random.PRNGKey(2), (4, 512, 512), dtype=jnp.float32)
    out_med = gelu(x_med)
    jax.block_until_ready(out_med)
    assert jnp.allclose(out_med, _gelu_ref(x_med), atol=1e-5, rtol=1e-5)

    # Ragged size exercises the (rare) padded path.
    x_rag = jax.random.normal(jax.random.PRNGKey(1), (3, 5, 7), dtype=jnp.float32)
    out_rag = gelu(x_rag)
    jax.block_until_ready(out_rag)
    assert jnp.allclose(out_rag, _gelu_ref(x_rag), atol=1e-5, rtol=1e-5)

    print("KERNEL_OK")
</pallas_src>

<mosaic_0001>
module attributes {stable_mosaic.version = 11 : i64} {
  func.func @_gelu_kernel(%arg0: i32, %arg1: memref<16x128xf32, #tpu.memory_space<vmem>>, %arg2: memref<16x128xf32, #tpu.memory_space<vmem>>) attributes {dimension_semantics = [#tpu.dimension_semantics<parallel>], iteration_bounds = array<i64: 1>, scalar_prefetch = 0 : i64, scratch_operands = 0 : i64, tpu.core_type = #tpu.core_type<tc>, window_params = [{transform_indices = @transform_0, window_bounds = array<i64: 16, 128>}, {transform_indices = @transform_1, window_bounds = array<i64: 16, 128>}]} {
    %c0 = arith.constant 0 : index
    %c0_0 = arith.constant 0 : index
    %0 = vector.load %arg1[%c0, %c0_0] : memref<16x128xf32, #tpu.memory_space<vmem>>, vector<16x128xf32>
    %1 = arith.mulf %0, %0 : vector<16x128xf32>
    %cst = arith.constant 0.0356774069 : f32
    %2 = vector.broadcast %cst : f32 to vector<16x128xf32>
    %3 = arith.mulf %2, %1 : vector<16x128xf32>
    %cst_1 = arith.constant 0.797884583 : f32
    %4 = vector.broadcast %cst_1 : f32 to vector<16x128xf32>
    %5 = arith.addf %4, %3 : vector<16x128xf32>
    %6 = arith.mulf %0, %5 : vector<16x128xf32>
    %cst_2 = arith.constant 5.000000e-01 : f32
    %7 = vector.broadcast %cst_2 : f32 to vector<16x128xf32>
    %8 = arith.mulf %7, %0 : vector<16x128xf32>
    %9 = math.tanh %6 : vector<16x128xf32>
    %cst_3 = arith.constant 1.000000e+00 : f32
    %10 = vector.broadcast %cst_3 : f32 to vector<16x128xf32>
    %11 = arith.addf %10, %9 : vector<16x128xf32>
    %12 = arith.mulf %8, %11 : vector<16x128xf32>
    %c0_4 = arith.constant 0 : index
    %c0_5 = arith.constant 0 : index
    %13 = vector.load %arg2[%c0_4, %c0_5] : memref<16x128xf32, #tpu.memory_space<vmem>>, vector<16x128xf32>
    tpu.vector_store %arg2[%c0_4, %c0_5], %12 {strides = array<i32>} : memref<16x128xf32, #tpu.memory_space<vmem>>, vector<16x128xf32>,
    return
  }
  func.func @transform_0(%arg0: i32) -> (i32, i32) {
    %c0_i32 = arith.constant 0 : i32
    %c0_i32_0 = arith.constant 0 : i32
    return %arg0, %c0_i32 : i32, i32
  }
  func.func @transform_1(%arg0: i32) -> (i32, i32) {
    %c0_i32 = arith.constant 0 : i32
    %c0_i32_0 = arith.constant 0 : i32
    return %arg0, %c0_i32 : i32, i32
  }
}

</mosaic_0001>

<llo_original>
// kernel: tpu_custom_call.1
$region0: #{tpu_custom_call.1}
  #allocation0 [shape = 'u32[]', space=smem, size = 0x4, offset = 0x4, fixed_abs, tag = 'smem constant byte address 0x4 - core index']
  #allocation1 [shape = 'u32[144,128]{1,0:T(1,128)}', space=vmem, size = 0x12000, scoped, tag = 'internal scratch']
  %s0 = inlined_call_operand.hbm [shape: f32[16,128], index: 0, kind: input, shape index: {}]
  %s1 = inlined_call_operand.hbm [shape: f32[16,128], index: 1, kind: output, shape index: {}]
  %s2 = sld [smem:[#allocation0]]
  $region18: #{tpu_custom_call.1} parent=0
    _
  %s4 = ssub.s32 1, %s2
  %s5 = scalar_select 0, %s4, %s2
  $region1: #{tpu_custom_call.1} parent=0
    #allocation2 [shape = 'u8[8192]{0}', space=vmem, size = 0x2000, scoped, tag = 'input window, operand 0, single buffered']
    #allocation3 [shape = 's32[1]{0}', space=sflag, size = 0x4, scoped, tag = 'scoped memory for tpu_custom_call.1']
    #allocation4 [shape = 's32[1]{0}', space=sflag, size = 0x4, scoped, tag = 'scoped memory for tpu_custom_call.1']
    #allocation5 [shape = 'u8[8192]{0}', space=vmem, size = 0x2000, scoped, tag = 'output window, operand 0, single buffered']
    %6 = vsyncpa [#allocation3], 0
    %7 = vsyncpa [#allocation4], 0
    // Predicated region
    $region2: #{tpu_custom_call.1} parent=1 // pred_check
      _
    $region3: #{tpu_custom_call.1} parent=1 // pred_check_branch
      %9 = sbr.rel (0) target = $region5
    $region4: #{tpu_custom_call.1} parent=1 // pred_region
      %s11 = ssub.s32 256, 256
      %12 = vsyncadd [#allocation3], %s11
      %s13 = sshll.u32 [#allocation2], 4
      %s14 = int_to_ptr.vmem [resolvable:$true] %s13
      %19 = dma.hbm_to_vmem [thread:$0]  %s0, 256, %s14, [#allocation3], 128, 128, 8
    $region5: #{tpu_custom_call.1} parent=1 // pred_fallthru
      _
    // Predicated region
    $region6: #{tpu_custom_call.1} parent=1 // pred_check
      _
    $region7: #{tpu_custom_call.1} parent=1 // pred_check_branch
      %21 = sbr.rel (0) target = $region9
    $region8: #{tpu_custom_call.1} parent=1 // pred_region
      %22 = dma.done [#allocation3], 256
    $region9: #{tpu_custom_call.1} parent=1 // pred_fallthru
      _
    %v23 = vld [vmem:[#allocation2] sm:$0xff]
    %v24 = vld [vmem:[#allocation2 + $0x8] sm:$0xff]
    %v25 = vmul.f32 %v23, %v23
    %v26 = vmul.f32 %v24, %v24
    %v27 = vmul.f32 %v25, 0.035677407
    %v28 = vmul.f32 %v26, 0.035677407
    %v29 = vadd.f32 %v27, 0.7978846
    %v30 = vadd.f32 %v28, 0.7978846
    %v31 = vmul.f32 %v23, %v29
    %v32 = vmul.f32 %v24, %v30
    %v33 = vmul.f32 %v23, 0.5
    %v34 = vmul.f32 %v24, 0.5
    %v35 = vtanh.pop %v31
    %v36 = vtanh.pop %v32
    %v37 = vadd.f32 %v35, 1.0
    %v38 = vadd.f32 %v36, 1.0
    %v39 = vmul.f32 %v33, %v37
    %v40 = vmul.f32 %v34, %v38
    %41 = vst [vmem:[#allocation5] sm:$0xff] %v39
    %42 = vst [vmem:[#allocation5 + $0x8] sm:$0xff] %v40
    // Predicated region
    $region10: #{tpu_custom_call.1} parent=1 // pred_check
      _
    $region11: #{tpu_custom_call.1} parent=1 // pred_check_branch
      %44 = sbr.rel (0) target = $region13
    $region12: #{tpu_custom_call.1} parent=1 // pred_region
      %s46 = ssub.s32 256, 256
      %47 = vsyncadd [#allocation4], %s46
      %s48 = sshll.u32 [#allocation5], 4
      %s49 = int_to_ptr.vmem [resolvable:$true] %s48
      %54 = dma.vmem_to_hbm [thread:$0]  %s49, 256, %s1, [#allocation4], 128, 128, 8
    $region13: #{tpu_custom_call.1} parent=1 // pred_fallthru
      _
    // Predicated region
    $region14: #{tpu_custom_call.1} parent=1 // pred_check
      _
    $region15: #{tpu_custom_call.1} parent=1 // pred_check_branch
      %56 = sbr.rel (0) target = $region17
    $region16: #{tpu_custom_call.1} parent=1 // pred_region
      %57 = dma.done [#allocation4], 256
    $region17: #{tpu_custom_call.1} parent=1 // pred_fallthru
      _
    %58 = vsyncpa [#allocation3], 1
    %59 = vsyncpa [#allocation4], 1

</llo_original>
